<compile_context>
chip_gen: v5e
topology: v5e:2x2
jax: 0.10.0
libtpu: 0.0.40
codegen_flags: <defaults>
</compile_context>

<pallas_src>
import functools
import numpy as np

import jax
import jax.numpy as jnp
from jax import lax
from jax.experimental import pallas as pl
from jax.experimental.pallas import tpu as pltpu

EPS = 1e-5          # nn.BatchNorm2d default eps
ROW = 128           # padded row stride (one lane tile) for internal activations
CH = 32             # conv channels
NWAY = 5
CIN1_PAD = 8        # conv1 input channels padded 3 -> 8 (zero channels)
GP = 4              # pooled rows per selection matmul (stride-2 pool layers)


def _layer_cfgs(batch, img):
    cfgs = []
    H = W = img
    cins = [CIN1_PAD, CH, CH, CH]
    strides = [2, 2, 2, 1]            # maxpool4 is MaxPool2d(2, 1, 0)
    chunks = [1024, 512, 512, 512]    # lane-chunk per layer (vreg-resident acc)
    for i in range(4):
        Ho, Wo = H - 2, W - 2
        s = strides[i]
        Hp = (Ho - 2) // s + 1
        Wp = (Wo - 2) // s + 1
        M = batch * H * ROW
        chunk = chunks[i]
        n_chunks = -(-M // chunk)
        cfgs.append(dict(cin=cins[i], H=H, W=W, Ho=Ho, Wo=Wo, Hp=Hp, Wp=Wp,
                         s=s, M=M, chunk=chunk, n_chunks=n_chunks,
                         m_round=n_chunks * chunk, cnt=batch * Ho * Wo))
        H, W = Hp, Wp
    return cfgs


def _make_kernel(batch, cfgs, nproll_like):
    feat_lanes = cfgs[-1]['Hp'] * ROW          # 5 rows * 128 lanes per image

    def _hint(i):
        return i if isinstance(i, int) else pl.multiple_of(i, ROW)

    def _lshift(v, k):
        # out[:, i] = v[:, i + k].  Wrap-around only lands on tail lanes that
        # callers never consume.
        width = v.shape[-1]
        amt = (width - k) if nproll_like else k
        return pltpu.roll(v, amt, axis=1)

    def kernel(x_ref,
               w1, w2, w3, w4,
               cb1, cb2, cb3, cb4,
               g1, g2, g3, g4,
               bb1, bb2, bb3, bb4,
               mk1, mk2, mk3, mk4,
               e1, e2, e3, e4,
               fcw_ref, fcb_ref, eye_ref,
               out_ref, xbuf, ybuf):
        ws = (w1, w2, w3, w4)
        cbs = (cb1, cb2, cb3, cb4)
        gs = (g1, g2, g3, g4)
        bbs = (bb1, bb2, bb3, bb4)
        mks = (mk1, mk2, mk3, mk4)
        evs = (e1, e2, e3, e4)

        # Zero only the xbuf tail that layer-2's conv overhang reads before it
        # is ever written; all other reads hit data written earlier (finite),
        # and "garbage" anchors are excluded from BN stats by the lane masks
        # and never selected by the pooling.
        m2 = cfgs[1]['M']
        xb_lanes = xbuf.shape[1]
        if xb_lanes > m2:
            xbuf[:, m2:xb_lanes] = jnp.zeros((CH, xb_lanes - m2), jnp.float32)

        src = x_ref
        for li, cfg in enumerate(cfgs):
            cin, H, Hp, s = cfg['cin'], cfg['H'], cfg['Hp'], cfg['s']
            CHUNK, n_chunks, cnt = cfg['chunk'], cfg['n_chunks'], cfg['cnt']

            w_ref = ws[li]                        # (9, 32, cin), tap-major
            bias = cbs[li][...]                   # (32, 1)
            mask_ref = mks[li]                    # (1, m_round)

            # ---- pass 1: conv3x3 + bias + ReLU, masked BN sum / sumsq ------
            def p1_body(i, carry, src=src, w_ref=w_ref, bias=bias,
                        mask_ref=mask_ref, CHUNK=CHUNK):
                s_acc, q_acc = carry
                c0 = _hint(i * CHUNK)
                acc = None
                for dy in range(3):
                    sub = src[:, pl.ds(_hint(c0 + dy * ROW), CHUNK + ROW)]
                    for dx in range(3):
                        tap = sub if dx == 0 else _lshift(sub, dx)
                        tap = tap[:, 0:CHUNK]                 # (cin, CHUNK)
                        d = jnp.dot(w_ref[dy * 3 + dx], tap,
                                    preferred_element_type=jnp.float32)
                        acc = d if acc is None else acc + d
                act = jnp.maximum(acc + bias, 0.0)            # (32, CHUNK)
                m = mask_ref[:, pl.ds(c0, CHUNK)]             # (1, CHUNK)
                am = act * m
                s_acc = s_acc + jnp.sum(am, axis=1, keepdims=True)
                q_acc = q_acc + jnp.sum(am * act, axis=1, keepdims=True)
                ybuf[:, pl.ds(c0, CHUNK)] = act
                return s_acc, q_acc

            zz = jnp.zeros((CH, 1), jnp.float32)
            s_sum, q_sum = lax.fori_loop(0, n_chunks, p1_body, (zz, zz))

            # BatchNorm, training mode (biased batch statistics).
            inv_cnt = 1.0 / float(cnt)
            mean = s_sum * inv_cnt
            var = jnp.maximum(q_sum * inv_cnt - mean * mean, 0.0)
            inv = lax.rsqrt(var + EPS)
            scale = inv * gs[li][...]
            shift = bbs[li][...] - mean * scale

            # ---- pass 2: BN apply + 2x2 max-pool into next layer's input ---
            ev = evs[li][...]                                 # (128, 128)

            def do_group(n, hp0, g_cnt, scale=scale, shift=shift, ev=ev,
                         H=H, Hp=Hp, s=s):
                hmaxs = []
                for g in range(g_cnt):
                    base = _hint((n * H + (hp0 + g) * s) * ROW)
                    pair = ybuf[:, pl.ds(base, 2 * ROW)] * scale + shift
                    vm = jnp.maximum(pair[:, 0:ROW], pair[:, ROW:2 * ROW])
                    hm = jnp.maximum(vm, _lshift(vm, 1))      # (32, 128)
                    hmaxs.append(hm)
                lhs = hmaxs[0] if g_cnt == 1 else jnp.concatenate(hmaxs, axis=0)
                sel = jnp.dot(lhs, ev, preferred_element_type=jnp.float32)
                for g in range(g_cnt):
                    dst = _hint((n * Hp + hp0 + g) * ROW)
                    xbuf[:, pl.ds(dst, ROW)] = sel[g * CH:(g + 1) * CH, :]

            if s == 2:
                n_full, rem = Hp // GP, Hp % GP
                for n in range(batch):
                    if n_full:
                        def grp_body(gidx, carry, n=n):
                            do_group(n, gidx * GP, GP)
                            return carry
                        lax.fori_loop(0, n_full, grp_body, 0)
                    if rem:
                        do_group(n, n_full * GP, rem)
            else:
                # Stride-1 pool (block 4): one contiguous slab per image.
                for n in range(batch):
                    base = n * H * ROW
                    slab = ybuf[:, base:base + (Hp + 1) * ROW] * scale + shift
                    wv = Hp * ROW
                    vm = jnp.maximum(slab[:, 0:wv], slab[:, ROW:ROW + wv])
                    hm = jnp.maximum(vm, _lshift(vm, 1))
                    lhs = jnp.concatenate(
                        [hm[:, g * ROW:(g + 1) * ROW] for g in range(Hp)],
                        axis=0)
                    sel = jnp.dot(lhs, ev, preferred_element_type=jnp.float32)
                    for g in range(Hp):
                        dst = (n * Hp + g) * ROW
                        xbuf[:, dst:dst + ROW] = sel[g * CH:(g + 1) * CH, :]

            src = xbuf

        # ---- fully connected: logits[n, k] = sum_{c,p} feat * w + b ---------
        fcb = fcb_ref[...]                                    # (1, NWAY)
        for n in range(batch):
            xn = xbuf[:, n * feat_lanes:(n + 1) * feat_lanes]  # (32, 640)
            acc5 = None
            for k in range(NWAY):
                col = jnp.sum(xn * fcw_ref[k], axis=1, keepdims=True)  # (32,1)
                c5 = col * eye_ref[k:k + 1, :]                         # (32,5)
                acc5 = c5 if acc5 is None else acc5 + c5
            out_ref[n:n + 1, :] = jnp.sum(acc5, axis=0, keepdims=True) + fcb

    return kernel


# ------------------------------ wrapper glue -------------------------------


def _prep_input(x, lanes_in):
    # NCHW (N,3,H,W) -> (8, lanes_in), lane index = (n*H + h)*128 + w
    n, c, h, w = x.shape
    xt = jnp.transpose(x, (1, 0, 2, 3))
    xt = jnp.pad(xt, ((0, CIN1_PAD - c), (0, 0), (0, 0), (0, ROW - w)))
    xt = xt.reshape(CIN1_PAD, n * h * ROW)
    return jnp.pad(xt, ((0, 0), (0, lanes_in - n * h * ROW)))


def _prep_conv_w(w, cin_pad):
    # torch (Cout, Cin, 3, 3) -> (9, Cout, cin_pad), tap index t = dy*3 + dx
    cout, cin = w.shape[0], w.shape[1]
    w = jnp.transpose(w, (2, 3, 0, 1)).reshape(9, cout, cin)
    if cin_pad > cin:
        w = jnp.pad(w, ((0, 0), (0, 0), (0, cin_pad - cin)))
    return w


def _prep_fc_w(w):
    # torch (5, 800) with feature index c*25 + hp*5 + wp -> (5, 32, 5*128)
    w = w.reshape(NWAY, CH, 5, 5)
    w = jnp.pad(w, ((0, 0), (0, 0), (0, 0), (0, ROW - 5)))
    return w.reshape(NWAY, CH, 5 * ROW)


def _valid_mask(batch, H, Ho, Wo, m_round):
    m = np.zeros((batch, H, ROW), np.float32)
    m[:, :Ho, :Wo] = 1.0
    out = np.zeros((1, m_round), np.float32)
    out[0, :batch * H * ROW] = m.reshape(-1)
    return out


def _pool_select(Wp, stride):
    # (128, 128) 0/1 matrix picking column stride*wp into output lane wp.
    e = np.zeros((ROW, ROW), np.float32)
    e[np.arange(Wp) * stride, np.arange(Wp)] = 1.0
    return e


def _detect_roll_semantics():
    """True iff pltpu.roll follows np.roll (positive shift -> higher indices)."""
    def probe(x_ref, o_ref):
        o_ref[...] = pltpu.roll(x_ref[...], 1, axis=1)

    x = jnp.broadcast_to(jnp.arange(ROW, dtype=jnp.float32), (8, ROW))
    vmem = pl.BlockSpec(memory_space=pltpu.MemorySpace.VMEM)
    out = jax.jit(pl.pallas_call(
        probe,
        out_shape=jax.ShapeDtypeStruct((8, ROW), jnp.float32),
        in_specs=[vmem], out_specs=vmem,
    ))(x)
    return bool(out[0, 0] == float(ROW - 1))


@functools.partial(jax.jit, static_argnames=("nproll_like",))
def maml_forward(x, params, nproll_like=True):
    batch, _, img, _ = x.shape
    cfgs = _layer_cfgs(batch, img)
    assert cfgs[-1]['Hp'] * cfgs[-1]['Wp'] * CH == params['fc_w'].shape[1]

    lanes_in = cfgs[0]['m_round'] + 3 * ROW
    xb_lanes = cfgs[1]['m_round'] + 3 * ROW
    yb_lanes = cfgs[0]['m_round']

    x_p = _prep_input(x, lanes_in)
    conv_ws = [_prep_conv_w(params[f"conv{i}_w"], CIN1_PAD if i == 1 else CH)
               for i in (1, 2, 3, 4)]
    conv_bs = [params[f"conv{i}_b"].reshape(CH, 1) for i in (1, 2, 3, 4)]
    gammas = [params[f"bn{i}_g"].reshape(CH, 1) for i in (1, 2, 3, 4)]
    betas = [params[f"bn{i}_b"].reshape(CH, 1) for i in (1, 2, 3, 4)]
    masks = [jnp.asarray(_valid_mask(batch, c['H'], c['Ho'], c['Wo'],
                                     c['m_round'])) for c in cfgs]
    sels = [jnp.asarray(_pool_select(c['Wp'], c['s'])) for c in cfgs]
    fcw = _prep_fc_w(params['fc_w'])
    fcb = params['fc_b'].reshape(1, NWAY)
    eye5 = jnp.eye(NWAY, dtype=jnp.float32)

    vmem = pl.BlockSpec(memory_space=pltpu.MemorySpace.VMEM)
    kernel = _make_kernel(batch, cfgs, nproll_like)
    return pl.pallas_call(
        kernel,
        out_shape=jax.ShapeDtypeStruct((batch, NWAY), jnp.float32),
        in_specs=[vmem] * 28,
        out_specs=vmem,
        scratch_shapes=[pltpu.VMEM((CH, xb_lanes), jnp.float32),
                        pltpu.VMEM((CH, yb_lanes), jnp.float32)],
        compiler_params=pltpu.CompilerParams(
            vmem_limit_bytes=16 * 1024 * 1024),
    )(x_p, *conv_ws, *conv_bs, *gammas, *betas, *masks, *sels, fcw, fcb, eye5)


def init_params(key):
    # Deterministic synthetic parameters in true PyTorch layouts.
    params = {}
    cins = [3, 32, 32, 32]
    for i in range(4):
        key, k1, k2, k3, k4 = jax.random.split(key, 5)
        cin = cins[i]
        params[f"conv{i+1}_w"] = 0.1 * jax.random.normal(
            k1, (CH, cin, 3, 3), jnp.float32)
        params[f"conv{i+1}_b"] = 0.1 * jax.random.normal(k2, (CH,), jnp.float32)
        params[f"bn{i+1}_g"] = 1.0 + 0.1 * jax.random.normal(k3, (CH,),
                                                             jnp.float32)
        params[f"bn{i+1}_b"] = 0.1 * jax.random.normal(k4, (CH,), jnp.float32)
    key, k1, k2 = jax.random.split(key, 3)
    params["fc_w"] = 0.05 * jax.random.normal(k1, (NWAY, 800), jnp.float32)
    params["fc_b"] = 0.05 * jax.random.normal(k2, (NWAY,), jnp.float32)
    return params


if __name__ == "__main__":
    key = jax.random.PRNGKey(0)
    kx, kp = jax.random.split(key)
    # fc expects 800 = 32*5*5 features => input spatial size must be 78x78.
    x = jax.random.normal(kx, (2, 3, 78, 78), jnp.float32)   # NCHW, like torch
    params = init_params(kp)
    nproll_like = _detect_roll_semantics()
    out = jax.block_until_ready(maml_forward(x, params, nproll_like=nproll_like))
    assert out.shape == (2, NWAY)
    assert bool(jnp.all(jnp.isfinite(out)))
    print("KERNEL_OK")
</pallas_src>

<mosaic_0001>
module attributes {stable_mosaic.version = 11 : i64} {
  func.func @probe(%arg0: memref<8x128xf32, #tpu.memory_space<vmem>>, %arg1: memref<8x128xf32, #tpu.memory_space<vmem>>) attributes {dimension_semantics = [], scalar_prefetch = 0 : i64, scratch_operands = 0 : i64, tpu.core_type = #tpu.core_type<tc>} {
    %c0 = arith.constant 0 : index
    %c0_0 = arith.constant 0 : index
    %0 = vector.load %arg0[%c0, %c0_0] : memref<8x128xf32, #tpu.memory_space<vmem>>, vector<8x128xf32>
    %c1_i32 = arith.constant 1 : i32
    %1 = tpu.dynamic_rotate %0 by %c1_i32 dim 1 : vector<8x128xf32>, i32 -> vector<8x128xf32>
    %c0_1 = arith.constant 0 : index
    %c0_2 = arith.constant 0 : index
    %2 = vector.load %arg1[%c0_1, %c0_2] : memref<8x128xf32, #tpu.memory_space<vmem>>, vector<8x128xf32>
    tpu.vector_store %arg1[%c0_1, %c0_2], %1 {strides = array<i32>} : memref<8x128xf32, #tpu.memory_space<vmem>>, vector<8x128xf32>,
    return
  }
}

</mosaic_0001>

<llo_original>
// kernel: tpu_custom_call.1
$region0: #{tpu_custom_call.1}
  #allocation0 [shape = 'u32[]', space=smem, size = 0x4, offset = 0x4, fixed_abs, tag = 'smem constant byte address 0x4 - core index']
  #allocation1 [shape = 'u32[72,128]{1,0:T(1,128)}', space=vmem, size = 0x9000, scoped, tag = 'internal scratch']
  %s0 = inlined_call_operand.hbm [shape: f32[8,128], index: 0, kind: input, shape index: {}]
  %s1 = inlined_call_operand.hbm [shape: f32[8,128], index: 1, kind: output, shape index: {}]
  %s2 = sld [smem:[#allocation0]]
  $region18: #{tpu_custom_call.1} parent=0
    _
  %s4 = ssub.s32 1, %s2
  %s5 = scalar_select 0, %s4, %s2
  $region1: #{tpu_custom_call.1} parent=0
    #allocation2 [shape = 'u8[4096]{0}', space=vmem, size = 0x1000, scoped, tag = 'input window, operand 0, single buffered']
    #allocation3 [shape = 's32[1]{0}', space=sflag, size = 0x4, scoped, tag = 'scoped memory for tpu_custom_call.1']
    #allocation4 [shape = 's32[1]{0}', space=sflag, size = 0x4, scoped, tag = 'scoped memory for tpu_custom_call.1']
    #allocation5 [shape = 'u8[4096]{0}', space=vmem, size = 0x1000, scoped, tag = 'output window, operand 0, single buffered']
    %6 = vsyncpa [#allocation3], 0
    %7 = vsyncpa [#allocation4], 0
    // Predicated region
    $region2: #{tpu_custom_call.1} parent=1 // pred_check
      _
    $region3: #{tpu_custom_call.1} parent=1 // pred_check_branch
      %9 = sbr.rel (0) target = $region5
    $region4: #{tpu_custom_call.1} parent=1 // pred_region
      %11 = vsyncadd [#allocation3], 0
      %s13 = sshll.u32 %s0, 4
      %s14 = int_to_ptr.hbm [resolvable:$true] %s13
      %s15 = sshll.u32 [#allocation2], 4
      %s16 = int_to_ptr.vmem [resolvable:$true] %s15
      %18 = dma.hbm_to_vmem [thread:$0]  %s14, 128, %s16, [#allocation3]
    $region5: #{tpu_custom_call.1} parent=1 // pred_fallthru
      _
    // Predicated region
    $region6: #{tpu_custom_call.1} parent=1 // pred_check
      _
    $region7: #{tpu_custom_call.1} parent=1 // pred_check_branch
      %20 = sbr.rel (0) target = $region9
    $region8: #{tpu_custom_call.1} parent=1 // pred_region
      %22 = dma.done [#allocation3], 128
    $region9: #{tpu_custom_call.1} parent=1 // pred_fallthru
      _
    %v23 = vld [vmem:[#allocation2] sm:$0xff]
    %24 = vrot.lane.b32.xlu0 %v23, 1
    %v25 = vpop.permute.xlu0 %24
    %26 = vst [vmem:[#allocation5] sm:$0xff] %v25
    // Predicated region
    $region10: #{tpu_custom_call.1} parent=1 // pred_check
      _
    $region11: #{tpu_custom_call.1} parent=1 // pred_check_branch
      %28 = sbr.rel (0) target = $region13
    $region12: #{tpu_custom_call.1} parent=1 // pred_region
      %30 = vsyncadd [#allocation4], 0
      %s32 = sshll.u32 [#allocation5], 4
      %s33 = int_to_ptr.vmem [resolvable:$true] %s32
      %s34 = sshll.u32 %s1, 4
      %s35 = int_to_ptr.hbm [resolvable:$true] %s34
      %37 = dma.vmem_to_hbm [thread:$0]  %s33, 128, %s35, [#allocation4]
    $region13: #{tpu_custom_call.1} parent=1 // pred_fallthru
      _
    // Predicated region
    $region14: #{tpu_custom_call.1} parent=1 // pred_check
      _
    $region15: #{tpu_custom_call.1} parent=1 // pred_check_branch
      %39 = sbr.rel (0) target = $region17
    $region16: #{tpu_custom_call.1} parent=1 // pred_region
      %41 = dma.done [#allocation4], 128
    $region17: #{tpu_custom_call.1} parent=1 // pred_fallthru
      _
    %42 = vsyncpa [#allocation3], 1
    %43 = vsyncpa [#allocation4], 1

</llo_original>
